<compile_context>
chip_gen: v6e
topology: v6e:2x2x1
jax: 0.10.0
libtpu: 0.0.40
codegen_flags: <defaults>
</compile_context>

<pallas_src>
import functools

import jax
import jax.numpy as jnp
from jax.experimental import pallas as pl
from jax.experimental.pallas import tpu as pltpu

_LANE = 128


def _transition_kernel(x_ref, scale_ref, bias_ref, w4_ref, o_ref, *, bf16_vpu):
    """One lane-tile of pooled output positions per grid step.

    x_ref:     (4*Cin, TM)   bf16  sublanes = (tap, cin), lanes = pooled position
    scale_ref: (4*Cin, 1)    f32   folded BN scale (gamma / sqrt(var+eps)), tiled x4
    bias_ref:  (4*Cin, 1)    f32   folded BN bias  (beta - mean*scale),     tiled x4
    w4_ref:    (Cout, 4*Cin) bf16  0.25 * [w w w w]  (2x2 avg-pool folded into conv)
    o_ref:     (Cout, TM)    f32   conv(avg_pool(relu(bn(x)))) for this tile
    """
    if bf16_vpu:
        # v6e / v7x: bf16 VALU -- keep the elementwise path narrow.
        y = jnp.maximum(
            x_ref[...] * scale_ref[...].astype(jnp.bfloat16)
            + bias_ref[...].astype(jnp.bfloat16),
            0.0)
    else:
        # v5e: no bf16 VALU -- BN + ReLU in f32, feed the MXU bf16.
        y = jnp.maximum(
            x_ref[...].astype(jnp.float32) * scale_ref[...] + bias_ref[...],
            0.0).astype(jnp.bfloat16)
    # 1x1 conv with the 2x2 average pool folded in: one MXU matmul, f32 acc.
    o_ref[...] = jnp.dot(w4_ref[...], y, preferred_element_type=jnp.float32)


@functools.lru_cache(maxsize=1)
def _bf16_vpu() -> bool:
    """True on chips whose VALU natively handles bf16 (v6e / v7x).

    Either branch is numerically valid everywhere; this only picks the faster
    elementwise dtype per generation.
    """
    try:
        kind = jax.devices()[0].device_kind.lower()
    except Exception:
        return False
    return not any(tag in kind for tag in ("v2", "v3", "v4", "v5"))


def _choose_lane_tile(rows, four_c):
    """Largest power-of-two lane tile (multiple of 128) such that
    (a) the double-buffered bf16 input block stays within a modest VMEM budget
    (b) there are >= 2 grid steps whenever rows allow it (v7x megacore)."""
    tm = 4096
    while tm > _LANE and 2 * tm * four_c * 2 > (12 << 20):
        tm //= 2
    while tm > _LANE and 2 * tm > rows:
        tm //= 2
    return tm


@functools.partial(jax.jit, static_argnames=("eps",))
def transition_forward(x_nchw, gamma, beta, conv_w, eps=1e-5):
    """Matches Transition.forward for a freshly-constructed module (train-mode BN).

    x_nchw: (N, Cin, H, W) float32
    gamma, beta: (Cin,)
    conv_w: (Cout, Cin, 1, 1)
    returns: (N, Cout, H//2, W//2)
    """
    N, C, H, W = x_nchw.shape
    Cout = conv_w.shape[0]
    Ho, Wo = H // 2, W // 2
    rows = N * Ho * Wo
    four_c = 4 * C

    # --- glue: single read of x -> lane-dense window-tap layout, bf16 ---
    # xp[(2di+dj)*C + c, n*Ho*Wo + ho*Wo + wo] = x[n, c, 2ho+di, 2wo+dj]
    xt = x_nchw[:, :, :2 * Ho, :2 * Wo].reshape(N, C, Ho, 2, Wo, 2)
    xp = jnp.transpose(xt, (3, 5, 1, 0, 2, 4)).reshape(four_c, rows)
    xp = xp.astype(jnp.bfloat16)

    # --- glue: BN batch stats (train mode, biased var) from the SAME bf16
    # buffer the kernel consumes; single fused pass via E[x^2]-mean^2 (swap to
    # a centered two-pass if the data has |mean| >> std).
    xf = xp.astype(jnp.float32).reshape(4, C, rows)
    mean = jnp.mean(xf, axis=(0, 2))
    ex2 = jnp.mean(xf * xf, axis=(0, 2))
    var = jnp.maximum(ex2 - mean * mean, 0.0)
    scale = gamma.astype(jnp.float32) / jnp.sqrt(var + eps)          # (C,)
    bias = beta.astype(jnp.float32) - mean * scale                   # (C,)
    scale4 = jnp.tile(scale, 4).reshape(four_c, 1)
    bias4 = jnp.tile(bias, 4).reshape(four_c, 1)

    # 2x2 average pool (and its 0.25 factor) folded into the 1x1 conv weight.
    w = conv_w.reshape(Cout, C).astype(jnp.float32)
    w4 = (0.25 * jnp.tile(w, (1, 4))).astype(jnp.bfloat16)           # (Cout, 4C)

    # --- tiling: rows on the lane axis, padded to a multiple of the tile ---
    tm = _choose_lane_tile(rows, four_c)
    rows_padded = pl.cdiv(rows, tm) * tm
    if rows_padded != rows:
        xp = jnp.pad(xp, ((0, 0), (0, rows_padded - rows)))

    in_block = tm * four_c * 2
    out_block = tm * Cout * 4
    const = four_c * Cout * 2 + 2 * four_c * 4
    vmem_limit = int(max(2 * (in_block + out_block) + 2 * const + (4 << 20),
                         32 << 20))

    out_flat = pl.pallas_call(
        functools.partial(_transition_kernel, bf16_vpu=_bf16_vpu()),
        out_shape=jax.ShapeDtypeStruct((Cout, rows_padded), jnp.float32),
        grid_spec=pltpu.PrefetchScalarGridSpec(
            num_scalar_prefetch=0,
            grid=(rows_padded // tm,),
            in_specs=[
                pl.BlockSpec((four_c, tm), lambda i: (0, i)),    # xp (lane-dense)
                pl.BlockSpec((four_c, 1), lambda i: (0, 0)),     # BN scale
                pl.BlockSpec((four_c, 1), lambda i: (0, 0)),     # BN bias
                pl.BlockSpec((Cout, four_c), lambda i: (0, 0)),  # folded weight
            ],
            out_specs=pl.BlockSpec((Cout, tm), lambda i: (0, i)),
        ),
        compiler_params=pltpu.CompilerParams(
            dimension_semantics=("parallel",),
            vmem_limit_bytes=vmem_limit),
    )(xp, scale4, bias4, w4)

    # --- glue: (Cout, rows) -> NCHW (small: pooled output only) ---
    out = out_flat[:, :rows].reshape(Cout, N, Ho, Wo)
    return jnp.transpose(out, (1, 0, 2, 3)).astype(x_nchw.dtype)


def _reference(x, gamma, beta, conv_w, eps=1e-5):
    """Pure-JAX reference of the PyTorch forward (train-mode BN)."""
    mean = jnp.mean(x, axis=(0, 2, 3), keepdims=True)
    var = jnp.mean((x - mean) ** 2, axis=(0, 2, 3), keepdims=True)
    y = (x - mean) / jnp.sqrt(var + eps)
    y = y * gamma[None, :, None, None] + beta[None, :, None, None]
    y = jnp.maximum(y, 0.0)
    z = jnp.einsum('nchw,oc->nohw', y, conv_w[:, :, 0, 0])
    n, co, h, w = z.shape
    return z.reshape(n, co, h // 2, 2, w // 2, 2).mean(axis=(3, 5))


if __name__ == "__main__":
    # Small shapes consistent with the module: N=2, inplanes=16, outplanes=8, 16x16 spatial.
    N, Cin, Cout, H, W = 2, 16, 8, 16, 16

    key = jax.random.PRNGKey(0)
    kx, kg, kb, kw = jax.random.split(key, 4)

    x = jax.random.normal(kx, (N, Cin, H, W), dtype=jnp.float32)
    gamma = 1.0 + 0.1 * jax.random.normal(kg, (Cin,), dtype=jnp.float32)
    beta = 0.1 * jax.random.normal(kb, (Cin,), dtype=jnp.float32)
    # Conv2d(inplanes, outplanes, kernel_size=1, bias=False) weight: (Cout, Cin, 1, 1)
    conv_w = jax.random.normal(kw, (Cout, Cin, 1, 1), dtype=jnp.float32) * (1.0 / jnp.sqrt(Cin))

    out = transition_forward(x, gamma, beta, conv_w)
    jax.block_until_ready(out)

    assert out.shape == (N, Cout, H // 2, W // 2), out.shape
    assert jnp.all(jnp.isfinite(out))

    ref = _reference(x, gamma, beta, conv_w)
    # bf16 activation streaming + bf16 MXU operands -> loose tolerance.
    assert jnp.allclose(out, ref, atol=1e-1, rtol=1e-1), float(jnp.max(jnp.abs(out - ref)))

    print("KERNEL_OK")
</pallas_src>

<mosaic_0001>
module attributes {stable_mosaic.version = 11 : i64} {
  func.func @_transition_kernel(%arg0: i32, %arg1: memref<64x128xbf16, #tpu.memory_space<vmem>>, %arg2: memref<64x1xf32, #tpu.memory_space<vmem>>, %arg3: memref<64x1xf32, #tpu.memory_space<vmem>>, %arg4: memref<8x64xbf16, #tpu.memory_space<vmem>>, %arg5: memref<8x128xf32, #tpu.memory_space<vmem>>) attributes {dimension_semantics = [#tpu.dimension_semantics<parallel>], iteration_bounds = array<i64: 1>, scalar_prefetch = 0 : i64, scratch_operands = 0 : i64, tpu.core_type = #tpu.core_type<tc>, window_params = [{transform_indices = @transform_0, window_bounds = array<i64: 64, 128>}, {pipeline_mode = #tpu.pipeline_mode<synchronous>, transform_indices = @transform_1, window_bounds = array<i64: 64, 1>}, {pipeline_mode = #tpu.pipeline_mode<synchronous>, transform_indices = @transform_2, window_bounds = array<i64: 64, 1>}, {pipeline_mode = #tpu.pipeline_mode<synchronous>, transform_indices = @transform_3, window_bounds = array<i64: 8, 64>}, {transform_indices = @transform_4, window_bounds = array<i64: 8, 128>}]} {
    %c0 = arith.constant 0 : index
    %c0_0 = arith.constant 0 : index
    %0 = vector.load %arg1[%c0, %c0_0] : memref<64x128xbf16, #tpu.memory_space<vmem>>, vector<64x128xbf16>
    %c0_1 = arith.constant 0 : index
    %c0_2 = arith.constant 0 : index
    %1 = vector.load %arg2[%c0_1, %c0_2] : memref<64x1xf32, #tpu.memory_space<vmem>>, vector<64x1xf32>
    %2 = arith.truncf %1 : vector<64x1xf32> to vector<64x1xbf16>
    %3 = vector.broadcast %2 : vector<64x1xbf16> to vector<64x128xbf16>
    %4 = arith.mulf %0, %3 : vector<64x128xbf16>
    %c0_3 = arith.constant 0 : index
    %c0_4 = arith.constant 0 : index
    %5 = vector.load %arg3[%c0_3, %c0_4] : memref<64x1xf32, #tpu.memory_space<vmem>>, vector<64x1xf32>
    %6 = arith.truncf %5 : vector<64x1xf32> to vector<64x1xbf16>
    %7 = vector.broadcast %6 : vector<64x1xbf16> to vector<64x128xbf16>
    %8 = arith.addf %4, %7 : vector<64x128xbf16>
    %cst = arith.constant 0.000000e+00 : bf16
    %9 = vector.broadcast %cst : bf16 to vector<64x128xbf16>
    %10 = arith.maximumf %8, %9 : vector<64x128xbf16>
    %c0_5 = arith.constant 0 : index
    %c0_6 = arith.constant 0 : index
    %11 = vector.load %arg4[%c0_5, %c0_6] : memref<8x64xbf16, #tpu.memory_space<vmem>>, vector<8x64xbf16>
    %cst_7 = arith.constant dense<0.000000e+00> : vector<8x128xf32>
    %12 = tpu.matmul %11, %10, %cst_7 {dimension_numbers = #tpu.dot_dimension_numbers<[1], [0], [0], [1], [0, 0, 1, 1], [], []>} : vector<8x64xbf16>, vector<64x128xbf16>, vector<8x128xf32> -> vector<8x128xf32>
    %c0_8 = arith.constant 0 : index
    %c0_9 = arith.constant 0 : index
    %13 = vector.load %arg5[%c0_8, %c0_9] : memref<8x128xf32, #tpu.memory_space<vmem>>, vector<8x128xf32>
    tpu.vector_store %arg5[%c0_8, %c0_9], %12 {strides = array<i32>} : memref<8x128xf32, #tpu.memory_space<vmem>>, vector<8x128xf32>,
    return
  }
  func.func @transform_0(%arg0: i32) -> (i32, i32) {
    %c0_i32 = arith.constant 0 : i32
    %c0_i32_0 = arith.constant 0 : i32
    return %c0_i32, %arg0 : i32, i32
  }
  func.func @transform_1(%arg0: i32) -> (i32, i32) {
    %c0_i32 = arith.constant 0 : i32
    %c0_i32_0 = arith.constant 0 : i32
    %c0_i32_1 = arith.constant 0 : i32
    return %c0_i32, %c0_i32_0 : i32, i32
  }
  func.func @transform_2(%arg0: i32) -> (i32, i32) {
    %c0_i32 = arith.constant 0 : i32
    %c0_i32_0 = arith.constant 0 : i32
    %c0_i32_1 = arith.constant 0 : i32
    return %c0_i32, %c0_i32_0 : i32, i32
  }
  func.func @transform_3(%arg0: i32) -> (i32, i32) {
    %c0_i32 = arith.constant 0 : i32
    %c0_i32_0 = arith.constant 0 : i32
    %c0_i32_1 = arith.constant 0 : i32
    return %c0_i32, %c0_i32_0 : i32, i32
  }
  func.func @transform_4(%arg0: i32) -> (i32, i32) {
    %c0_i32 = arith.constant 0 : i32
    %c0_i32_0 = arith.constant 0 : i32
    return %c0_i32, %arg0 : i32, i32
  }
}

</mosaic_0001>

<llo_original>
// kernel: tile.17
$region0: #{tile.17}
  #allocation0 [shape = 's32[1]{0}', space=sflag, size = 0x4, scoped, tag = 'scoped memory for tile.17']
  %s0 = inlined_call_operand.vmem [shape: f32[16], index: 0, kind: input, shape index: {}]
  %s1 = inlined_call_operand.vmem [shape: f32[4,16], index: 1, kind: output, shape index: {}]
  // Predicated region
  $region2: #{tile.17} parent=0 // pred_check
    _
  $region3: #{tile.17} parent=0 // pred_check_branch
    %3 = sbr.rel (0) target = $region5
  $region4: #{tile.17} parent=0 // pred_region
    _
  $region5: #{tile.17} parent=0 // pred_fallthru
    _
  %v4 = vld [vmem:[%s0] ss:$0 sm:$0xff]
  %5 = vst [vmem:[%s1] sm:$0xf] %v4

// kernel: tile.0
$region0: #{tile.0}
  %s0 = inlined_call_operand.vmem [shape: f32[4,16], index: 0, kind: input, shape index: {}]
  %s1 = inlined_call_operand.vmem [shape: f32[64,1], index: 1, kind: output, shape index: {}]
  $region1: #{tile.0} parent=0
    #allocation0 [shape = 'u8[4096]{0}', space=vmem, size = 0x1000, scoped, tag = 'scoped mem for input reshape']
    %s3 = sshll.u32 1, 4
    %s4 = ssub.s32 %s3, 1
    %v5 = vld [vmem:[%s0] sm:%s4]
    %6 = vst [vmem:[#allocation0] sm:%s4] %v5
    %v7 = vld [vmem:[#allocation0] sm:$0xf]
    %vm8 = vcmask 7168
    %9 = vst.msk [vmem:[%s1] ss:$16 sm:$0x3] %vm8, %v7
    %10 = vst.msk [vmem:[%s1] ss:$16 sm:$0xc] %vm8, %v7
    %v11 = vld [vmem:[#allocation0] sm:$0xf]
    %12 = vrot.lane.b32.xlu0 %v11, 127
    %v13 = vpop.permute.xlu0 %12
    %vm14 = vcmask 7168
    %s15 = scalar_lea.vmem %s1, 1
    %16 = vst.msk [vmem:[%s15] ss:$16 sm:$0x3] %vm14, %v13
    %s17 = scalar_lea.vmem %s1, 1
    %18 = vst.msk [vmem:[%s17] ss:$16 sm:$0xc] %vm14, %v13
    %v19 = vld [vmem:[#allocation0] sm:$0xf]
    %20 = vrot.lane.b32.xlu0 %v19, 126
    %v21 = vpop.permute.xlu0 %20
    %vm22 = vcmask 7168
    %s23 = scalar_lea.vmem %s1, 2
    %24 = vst.msk [vmem:[%s23] ss:$16 sm:$0x3] %vm22, %v21
    %s25 = scalar_lea.vmem %s1, 2
    %26 = vst.msk [vmem:[%s25] ss:$16 sm:$0xc] %vm22, %v21
    %v27 = vld [vmem:[#allocation0] sm:$0xf]
    %28 = vrot.lane.b32.xlu0 %v27, 125
    %v29 = vpop.permute.xlu0 %28
    %vm30 = vcmask 7168
    %s31 = scalar_lea.vmem %s1, 3
    %32 = vst.msk [vmem:[%s31] ss:$16 sm:$0x3] %vm30, %v29
    %s33 = scalar_lea.vmem %s1, 3
    %34 = vst.msk [vmem:[%s33] ss:$16 sm:$0xc] %vm30, %v29
    %v35 = vld [vmem:[#allocation0] sm:$0xf]
    %36 = vrot.lane.b32.xlu0 %v35, 124
    %v37 = vpop.permute.xlu0 %36
    %vm38 = vcmask 7168
    %s39 = scalar_lea.vmem %s1, 4
    %40 = vst.msk [vmem:[%s39] ss:$16 sm:$0x3] %vm38, %v37
    %s41 = scalar_lea.vmem %s1, 4
    %42 = vst.msk [vmem:[%s41] ss:$16 sm:$0xc] %vm38, %v37
    %v43 = vld [vmem:[#allocation0] sm:$0xf]
    %44 = vrot.lane.b32.xlu0 %v43, 123
    %v45 = vpop.permute.xlu0 %44
    %vm46 = vcmask 7168
    %s47 = scalar_lea.vmem %s1, 5
    %48 = vst.msk [vmem:[%s47] ss:$16 sm:$0x3] %vm46, %v45
    %s49 = scalar_lea.vmem %s1, 5
    %50 = vst.msk [vmem:[%s49] ss:$16 sm:$0xc] %vm46, %v45
    %v51 = vld [vmem:[#allocation0] sm:$0xf]
    %52 = vrot.lane.b32.xlu0 %v51, 122
    %v53 = vpop.permute.xlu0 %52
    %vm54 = vcmask 7168
    %s55 = scalar_lea.vmem %s1, 6
    %56 = vst.msk [vmem:[%s55] ss:$16 sm:$0x3] %vm54, %v53
    %s57 = scalar_lea.vmem %s1, 6
    %58 = vst.msk [vmem:[%s57] ss:$16 sm:$0xc] %vm54, %v53
    %v59 = vld [vmem:[#allocation0] sm:$0xf]
    %60 = vrot.lane.b32.xlu0 %v59, 121
    %v61 = vpop.permute.xlu0 %60
    %vm62 = vcmask 7168
    %s63 = scalar_lea.vmem %s1, 7
    %64 = vst.msk [vmem:[%s63] ss:$16 sm:$0x3] %vm62, %v61
    %s65 = scalar_lea.vmem %s1, 7
    %66 = vst.msk [vmem:[%s65] ss:$16 sm:$0xc] %vm62, %v61
    %v67 = vld [vmem:[#allocation0] sm:$0xf]
    %68 = vrot.lane.b32.xlu0 %v67, 120
    %v69 = vpop.permute.xlu0 %68
    %vm70 = vcmask 7168
    %s71 = scalar_lea.vmem %s1, 8
    %72 = vst.msk [vmem:[%s71] ss:$16 sm:$0x3] %vm70, %v69
    %s73 = scalar_lea.vmem %s1, 8
    %74 = vst.msk [vmem:[%s73] ss:$16 sm:$0xc] %vm70, %v69
    %v75 = vld [vmem:[#allocation0] sm:$0xf]
    %76 = vrot.lane.b32.xlu0 %v75, 119
    %v77 = vpop.permute.xlu0 %76
    %vm78 = vcmask 7168
    %s79 = scalar_lea.vmem %s1, 9
    %80 = vst.msk [vmem:[%s79] ss:$16 sm:$0x3] %vm78, %v77
    %s81 = scalar_lea.vmem %s1, 9
    %82 = vst.msk [vmem:[%s81] ss:$16 sm:$0xc] %vm78, %v77
    %v83 = vld [vmem:[#allocation0] sm:$0xf]
    %84 = vrot.lane.b32.xlu0 %v83, 118
    %v85 = vpop.permute.xlu0 %84
    %vm86 = vcmask 7168
    %s87 = scalar_lea.vmem %s1, 10
    %88 = vst.msk [vmem:[%s87] ss:$16 sm:$0x3] %vm86, %v85
    %s89 = scalar_lea.vmem %s1, 10
    %90 = vst.msk [vmem:[%s89] ss:$16 sm:$0xc] %vm86, %v85
    %v91 = vld [vmem:[#allocation0] sm:$0xf]
    %92 = vrot.lane.b32.xlu0 %v91, 117
    %v93 = vpop.permute.xlu0 %92
    %vm94 = vcmask 7168
    %s95 = scalar_lea.vmem %s1, 11
    %96 = vst.msk [vmem:[%s95] ss:$16 sm:$0x3] %vm94, %v93
    %s97 = scalar_lea.vmem %s1, 11
    %98 = vst.msk [vmem:[%s97] ss:$16 sm:$0xc] %vm94, %v93
    %v99 = vld [vmem:[#allocation0] sm:$0xf]
    %100 = vrot.lane.b32.xlu0 %v99, 116
    %v101 = vpop.permute.xlu0 %100
    %vm102 = vcmask 7168
    %s103 = scalar_lea.vmem %s1, 12
    %104 = vst.msk [vmem:[%s103] ss:$16 sm:$0x3] %vm102, %v101
    %s105 = scalar_lea.vmem %s1, 12
    %106 = vst.msk [vmem:[%s105] ss:$16 sm:$0xc] %vm102, %v101
    %v107 = vld [vmem:[#allocation0] sm:$0xf]
    %108 = vrot.lane.b32.xlu0 %v107, 115
    %v109 = vpop.permute.xlu0 %108
    %vm110 = vcmask 7168
    %s111 = scalar_lea.vmem %s1, 13
    %112 = vst.msk [vmem:[%s111] ss:$16 sm:$0x3] %vm110, %v109
    %s113 = scalar_lea.vmem %s1, 13
    %114 = vst.msk [vmem:[%s113] ss:$16 sm:$0xc] %vm110, %v109
    %v115 = vld [vmem:[#allocation0] sm:$0xf]
    %116 = vrot.lane.b32.xlu0 %v115, 114
    %v117 = vpop.permute.xlu0 %116
    %vm118 = vcmask 7168
    %s119 = scalar_lea.vmem %s1, 14
    %120 = vst.msk [vmem:[%s119] ss:$16 sm:$0x3] %vm118, %v117
    %s121 = scalar_lea.vmem %s1, 14
    %122 = vst.msk [vmem:[%s121] ss:$16 sm:$0xc] %vm118, %v117
    %v123 = vld [vmem:[#allocation0] sm:$0xf]
    %124 = vrot.lane.b32.xlu0 %v123, 113
    %v125 = vpop.permute.xlu0 %124
    %vm126 = vcmask 7168
    %s127 = scalar_lea.vmem %s1, 15
    %128 = vst.msk [vmem:[%s127] ss:$16 sm:$0x3] %vm126, %v125
    %s129 = scalar_lea.vmem %s1, 15
    %130 = vst.msk [vmem:[%s129] ss:$16 sm:$0xc] %vm126, %v125

// kernel: transition_forward.1
$region0: #{transition_forward.1}
  #allocation0 [shape = 'u32[]', space=smem, size = 0x4, offset = 0x4, fixed_abs, tag = 'smem constant byte address 0x4 - core index']
  #allocation1 [shape = 'u32[144,128]{1,0:T(1,128)}', space=vmem, size = 0x12000, scoped, tag = 'internal scratch']
  %s0 = inlined_call_operand.vmem [shape: bf16[64,128], index: 0, kind: input, shape index: {}]
  %s1 = inlined_call_operand.vmem [shape: f32[64,1], index: 1, kind: input, shape index: {}]
  %s2 = inlined_call_operand.vmem [shape: f32[64,1], index: 2, kind: input, shape index: {}]
  %s3 = inlined_call_operand.vmem [shape: bf16[8,64], index: 3, kind: input, shape index: {}]
  %s4 = inlined_call_operand.vmem [shape: f32[8,128], index: 4, kind: output, shape index: {}]
  %s5 = sld [smem:[#allocation0]]
  $region26: #{transition_forward.1} parent=0
    _
  %s7 = ssub.s32 1, %s5
  %s8 = scalar_select 0, %s7, %s5
  // Predicated region
  $region2: #{transition_forward.1} parent=0 // pred_check
    _
  $region3: #{transition_forward.1} parent=0 // pred_check_branch
    %10 = sbr.rel (0) target = $region5
  $region4: #{transition_forward.1} parent=0 // pred_region
    _
  $region5: #{transition_forward.1} parent=0 // pred_fallthru
    _
  // Predicated region
  $region6: #{transition_forward.1} parent=0 // pred_check
    _
  $region7: #{transition_forward.1} parent=0 // pred_check_branch
    %12 = sbr.rel (0) target = $region9
  $region8: #{transition_forward.1} parent=0 // pred_region
    _
  $region9: #{transition_forward.1} parent=0 // pred_fallthru
    _
  // Predicated region
  $region10: #{transition_forward.1} parent=0 // pred_check
    _
  $region11: #{transition_forward.1} parent=0 // pred_check_branch
    %14 = sbr.rel (0) target = $region13
  $region12: #{transition_forward.1} parent=0 // pred_region
    _
  $region13: #{transition_forward.1} parent=0 // pred_fallthru
    _
  // Predicated region
  $region14: #{transition_forward.1} parent=0 // pred_check
    _
  $region15: #{transition_forward.1} parent=0 // pred_check_branch
    %16 = sbr.rel (0) target = $region17
  $region16: #{transition_forward.1} parent=0 // pred_region
    _
  $region17: #{transition_forward.1} parent=0 // pred_fallthru
    _
  %v18 = vld [vmem:[%s0] sm:$0xf]
  %v19 = vld [vmem:[%s0 + $0x4] sm:$0xf]
  %v20 = vld [vmem:[%s0 + $0x8] sm:$0xf]
  %v21 = vld [vmem:[%s0 + $0xc] sm:$0xf]
  %v22 = vld [vmem:[%s0 + $0x10] sm:$0xf]
  %v23 = vld [vmem:[%s0 + $0x14] sm:$0xf]
  %v24 = vld [vmem:[%s0 + $0x18] sm:$0xf]
  %v25 = vld [vmem:[%s0 + $0x1c] sm:$0xf]
  %v26 = vld [vmem:[%s1] sm:$0xff]
  %v27 = vld [vmem:[%s1 + $0x8] sm:$0xff]
  %v28 = vld [vmem:[%s1 + $0x10] sm:$0xff]
  %v29 = vld [vmem:[%s1 + $0x18] sm:$0xff]
  %v30 = vld [vmem:[%s1 + $0x20] sm:$0xff]
  %v31 = vld [vmem:[%s1 + $0x28] sm:$0xff]
  %v32 = vld [vmem:[%s1 + $0x30] sm:$0xff]
  %v33 = vld [vmem:[%s1 + $0x38] sm:$0xff]
  %v34 = vpack.c.bf16 %v27, %v26
  %v35 = vpack.c.bf16 %v29, %v28
  %v36 = vpack.c.bf16 %v31, %v30
  %v37 = vpack.c.bf16 %v33, %v32
  %39 = vset.pattern.permute.xlu0 0
  %40 = vperm.xlu0 %39, %v34
  %v41 = vpop.permute.xlu0 %40
  %43 = vset.pattern.permute.xlu0 0
  %44 = vperm.xlu0 %43, %v35
  %v45 = vpop.permute.xlu0 %44
  %47 = vset.pattern.permute.xlu0 0
  %48 = vperm.xlu0 %47, %v36
  %v49 = vpop.permute.xlu0 %48
  %51 = vset.pattern.permute.xlu0 0
  %52 = vperm.xlu0 %51, %v37
  %v53 = vpop.permute.xlu0 %52
  %v59 = vunpack.c.l.s4 839922192
  %v60 = vunpack.c.0.s8 %v59
  %v61 = vlaneseq
  %v62 = vshrl.u32 %v61, 7
  %v63 = vsub.s32 %v60, %v62
  %v64 = vrot.slane %v41, %v63
  %v66 = vunpack.c.l.s4 1985246804
  %v67 = vunpack.c.0.s8 %v66
  %v68 = vlaneseq
  %v69 = vshrl.u32 %v68, 7
  %v70 = vsub.s32 %v67, %v69
  %v71 = vrot.slane %v41, %v70
  %v73 = vunpack.c.l.s4 839922192
  %v74 = vunpack.c.0.s8 %v73
  %v75 = vlaneseq
  %v76 = vshrl.u32 %v75, 7
  %v77 = vsub.s32 %v74, %v76
  %v78 = vrot.slane %v45, %v77
  %v80 = vunpack.c.l.s4 1985246804
  %v81 = vunpack.c.0.s8 %v80
  %v82 = vlaneseq
  %v83 = vshrl.u32 %v82, 7
  %v84 = vsub.s32 %v81, %v83
  %v85 = vrot.slane %v45, %v84
  %v87 = vunpack.c.l.s4 839922192
  %v88 = vunpack.c.0.s8 %v87
  %v89 = vlaneseq
  %v90 = vshrl.u32 %v89, 7
  %v91 = vsub.s32 %v88, %v90
  %v92 = vrot.slane %v49, %v91
  %v94 = vunpack.c.l.s4 1985246804
  %v95 = vunpack.c.0.s8 %v94
  %v96 = vlaneseq
  %v97 = vshrl.u32 %v96, 7
  %v98 = vsub.s32 %v95, %v97
  %v99 = vrot.slane %v49, %v98
  %v101 = vunpack.c.l.s4 839922192
  %v102 = vunpack.c.0.s8 %v101
  %v103 = vlaneseq
  %v104 = vshrl.u32 %v103, 7
  %v105 = vsub.s32 %v102, %v104
  %v106 = vrot.slane %v53, %v105
  %v108 = vunpack.c.l.s4 1985246804
  %v109 = vunpack.c.0.s8 %v108
  %v110 = vlaneseq
  %v111 = vshrl.u32 %v110, 7
  %v112 = vsub.s32 %v109, %v111
  %v113 = vrot.slane %v53, %v112
  %v122 = vmul.bf16 %v18, %v64
  %v123 = vmul.bf16 %v19, %v71
  %v124 = vmul.bf16 %v20, %v78
  %v125 = vmul.bf16 %v21, %v85
  %v126 = vmul.bf16 %v22, %v92
  %v127 = vmul.bf16 %v23, %v99
  %v128 = vmul.bf16 %v24, %v106
  %v129 = vmul.bf16 %v25, %v113
  %v130 = vld [vmem:[%s2] sm:$0xff]
  %v131 = vld [vmem:[%s2 + $0x8] sm:$0xff]
  %v132 = vld [vmem:[%s2 + $0x10] sm:$0xff]
  %v133 = vld [vmem:[%s2 + $0x18] sm:$0xff]
  %v134 = vld [vmem:[%s2 + $0x20] sm:$0xff]
  %v135 = vld [vmem:[%s2 + $0x28] sm:$0xff]
  %v136 = vld [vmem:[%s2 + $0x30] sm:$0xff]
  %v137 = vld [vmem:[%s2 + $0x38] sm:$0xff]
  %v138 = vpack.c.bf16 %v131, %v130
  %v139 = vpack.c.bf16 %v133, %v132
  %v140 = vpack.c.bf16 %v135, %v134
  %v141 = vpack.c.bf16 %v137, %v136
  %143 = vset.pattern.permute.xlu0 0
  %144 = vperm.xlu0 %143, %v138
  %v145 = vpop.permute.xlu0 %144
  %147 = vset.pattern.permute.xlu0 0
  %148 = vperm.xlu0 %147, %v139
  %v149 = vpop.permute.xlu0 %148
  %151 = vset.pattern.permute.xlu0 0
  %152 = vperm.xlu0 %151, %v140
  %v153 = vpop.permute.xlu0 %152
  %155 = vset.pattern.permute.xlu0 0
  %156 = vperm.xlu0 %155, %v141
  %v157 = vpop.permute.xlu0 %156
  %v163 = vunpack.c.l.s4 839922192
  %v164 = vunpack.c.0.s8 %v163
  %v165 = vlaneseq
  %v166 = vshrl.u32 %v165, 7
  %v167 = vsub.s32 %v164, %v166
  %v168 = vrot.slane %v145, %v167
  %v170 = vunpack.c.l.s4 1985246804
  %v171 = vunpack.c.0.s8 %v170
  %v172 = vlaneseq
  %v173 = vshrl.u32 %v172, 7
  %v174 = vsub.s32 %v171, %v173
  %v175 = vrot.slane %v145, %v174
  %v177 = vunpack.c.l.s4 839922192
  %v178 = vunpack.c.0.s8 %v177
  %v179 = vlaneseq
  %v180 = vshrl.u32 %v179, 7
  %v181 = vsub.s32 %v178, %v180
  %v182 = vrot.slane %v149, %v181
  %v184 = vunpack.c.l.s4 1985246804
  %v185 = vunpack.c.0.s8 %v184
  %v186 = vlaneseq
  %v187 = vshrl.u32 %v186, 7
  %v188 = vsub.s32 %v185, %v187
  %v189 = vrot.slane %v149, %v188
  %v191 = vunpack.c.l.s4 839922192
  %v192 = vunpack.c.0.s8 %v191
  %v193 = vlaneseq
  %v194 = vshrl.u32 %v193, 7
  %v195 = vsub.s32 %v192, %v194
  %v196 = vrot.slane %v153, %v195
  %v198 = vunpack.c.l.s4 1985246804
  %v199 = vunpack.c.0.s8 %v198
  %v200 = vlaneseq
  %v201 = vshrl.u32 %v200, 7
  %v202 = vsub.s32 %v199, %v201
  %v203 = vrot.slane %v153, %v202
  %v205 = vunpack.c.l.s4 839922192
  %v206 = vunpack.c.0.s8 %v205
  %v207 = vlaneseq
  %v208 = vshrl.u32 %v207, 7
  %v209 = vsub.s32 %v206, %v208
  %v210 = vrot.slane %v157, %v209
  %v212 = vunpack.c.l.s4 1985246804
  %v213 = vunpack.c.0.s8 %v212
  %v214 = vlaneseq
  %v215 = vshrl.u32 %v214, 7
  %v216 = vsub.s32 %v213, %v215
  %v217 = vrot.slane %v157, %v216
  %v226 = vadd.bf16 %v122, %v168
  %v227 = vadd.bf16 %v123, %v175
  %v228 = vadd.bf16 %v124, %v182
  %v229 = vadd.bf16 %v125, %v189
  %v230 = vadd.bf16 %v126, %v196
  %v231 = vadd.bf16 %v127, %v203
  %v232 = vadd.bf16 %v128, %v210
  %v233 = vadd.bf16 %v129, %v217
  %v234 = vmax.bf16 %v226, 0
  %v235 = vmax.bf16 %v227, 0
  %v236 = vmax.bf16 %v228, 0
  %v237 = vmax.bf16 %v229, 0
  %v238 = vmax.bf16 %v230, 0
  %v239 = vmax.bf16 %v231, 0
  %v240 = vmax.bf16 %v232, 0
  %v241 = vmax.bf16 %v233, 0
  %v242 = vld [vmem:[%s3] sm:$0xf]
  %v251 = vunpack.c.l.b16 %v234
  %v252 = vunpack.c.l.b16 %v235
  %v253 = vunpack.c.l.b16 %v236
  %v254 = vunpack.c.l.b16 %v237
  %v255 = vunpack.c.l.b16 %v238
  %v256 = vunpack.c.l.b16 %v239
  %v257 = vunpack.c.l.b16 %v240
  %v258 = vunpack.c.l.b16 %v241
  %v259 = vpack.c.b16 %v252, %v251
  %v260 = vpack.c.b16 %v254, %v253
  %v261 = vpack.c.b16 %v256, %v255
  %v262 = vpack.c.b16 %v258, %v257
  %vm267 = vcmask 523264
  %v269 = vsel %vm267, %v242, 0
  %271 = vmatprep.subr.bf16.mxu0 0
  %272 = vmatpush1.bf16.msra.mxu0 0
  %273 = vmatprep.subr.bf16.mxu0 0
  %274 = vmatpush1.bf16.msra.mxu0 0
  %275 = vmatprep.subr.bf16.mxu0 0
  %276 = vmatpush1.bf16.msra.mxu0 0
  %277 = vmatprep.subr.bf16.mxu0 0
  %278 = vmatpush1.bf16.msra.mxu0 0
  %279 = vmatprep.subr.bf16.mxu0 0
  %280 = vmatpush1.bf16.msra.mxu0 %v262
  %281 = vmatprep.subr.bf16.mxu0 0
  %282 = vmatpush1.bf16.msra.mxu0 %v261
  %283 = vmatprep.subr.bf16.mxu0 0
  %284 = vmatpush1.bf16.msra.mxu0 %v260
  %285 = vmatprep.subr.bf16.mxu0 0
  %286 = vmatpush1.bf16.msra.mxu0 %v259
  %287 = vmatprep.subr.bf16.mxu0 0
  %288 = vmatpush2.bf16.msra.mxu0 0
  %289 = vmatprep.subr.bf16.mxu0 0
  %290 = vmatpush2.bf16.msra.mxu0 0
  %291 = vmatprep.subr.bf16.mxu0 0
  %292 = vmatpush2.bf16.msra.mxu0 0
  %293 = vmatprep.subr.bf16.mxu0 0
  %294 = vmatpush2.bf16.msra.mxu0 0
  %295 = vmatprep.subr.bf16.mxu0 0
  %296 = vmatpush2.bf16.msra.mxu0 0
  %297 = vmatprep.subr.bf16.mxu0 0
  %298 = vmatpush2.bf16.msra.mxu0 0
  %299 = vmatprep.subr.bf16.mxu0 0
  %300 = vmatpush2.bf16.msra.mxu0 0
  %301 = vmatprep.subr.bf16.mxu0 0
  %302 = vmatpush2.bf16.msra.mxu0 0
  %303 = vmatprep.mubr.bf16.mxu0 0
  %304 = vmatmul.mubr.bf16.gmra.mxu0 %v269
  %v305 = vpop.f32.mrf.mxu0
  %v306 = vadd.f32 0.0, %v305
  %v307 = vpop.f32.mrf.mxu0
  %v308 = vpop.f32.mrf.mxu0
  %v309 = vpop.f32.mrf.mxu0
  %310 = vdwg.mxu0
  %311 = vst [vmem:[%s4] sm:$0xff] %v306
  // Predicated region
  $region18: #{transition_forward.1} parent=0 // pred_check
    _
  $region19: #{transition_forward.1} parent=0 // pred_check_branch
    %313 = sbr.rel (0) target = $region21
  $region20: #{transition_forward.1} parent=0 // pred_region
    _
  $region21: #{transition_forward.1} parent=0 // pred_fallthru
    _
  // Predicated region
  $region22: #{transition_forward.1} parent=0 // pred_check
    _
  $region23: #{transition_forward.1} parent=0 // pred_check_branch
    %315 = sbr.rel (0) target = $region25
  $region24: #{transition_forward.1} parent=0 // pred_region
    _
  $region25: #{transition_forward.1} parent=0 // pred_fallthru
    _

</llo_original>
